<compile_context>
chip_gen: v6e
topology: v6e:2x2x1
jax: 0.10.0
libtpu: 0.0.40
codegen_flags: <defaults>
</compile_context>

<pallas_src>
import jax
import jax.numpy as jnp
from jax.experimental import pallas as pl
from jax.experimental.pallas import tpu as pltpu

LANES = 128
TARGET_TILE_BYTES = 4 * 1024 * 1024      # ~4 MiB of input per grid step
VMEM_LIMIT_BYTES = 32 * 1024 * 1024      # in+out double-buffered 4 MiB tiles = 16 MiB


# ----------------------------------------------------------------------------
# Pallas kernel: fake-quant (quantize + dequantize) of one (block_rows, 128) tile
# ----------------------------------------------------------------------------
def _lsq_quant_kernel(params_ref, x_ref, o_ref):
    # params_ref (SMEM, scalar-prefetched): [s_eff, 1/s_eff, beta, neg_thd, pos_thd]
    s = params_ref[0]
    inv_s = params_ref[1]
    beta = params_ref[2]
    neg = params_ref[3]
    pos = params_ref[4]

    x = x_ref[...].astype(jnp.float32)       # in-kernel upcast (free on VPU)
    xs = (x - beta) * inv_s                  # divide hoisted to prefetched 1/s
    xs = jnp.clip(xs, neg, pos)
    xq = jnp.round(xs)                       # round_ste forward value (ties-to-even, as torch.round)
    o_ref[...] = (xq * s + beta).astype(o_ref.dtype)


def _choose_block_rows(rows: int, itemsize: int) -> int:
    """Dtype-aware tile rows: ~TARGET_TILE_BYTES per step, >=2 grid steps when possible."""
    budget_rows = max(8, (TARGET_TILE_BYTES // (LANES * itemsize)) // 8 * 8)
    if rows <= 8:
        return rows                           # single full-extent block (legal: equals array dim)
    # Split into >=2 steps so both v7x TensorCores stream the slab ("parallel" axis).
    half_rows = ((rows + 1) // 2 + 7) // 8 * 8
    return min(budget_rows, half_rows)


def lsq_fake_quant(x, s_scale, beta, neg_thd, pos_thd):
    """Elementwise LSQ fake-quant of x (any shape) with scalar scale/beta."""
    orig_shape = x.shape
    orig_dtype = x.dtype
    n = x.size
    itemsize = jnp.dtype(orig_dtype).itemsize

    flat = x.reshape(-1)
    pad = 0
    if n % LANES != 0:
        # Rare ragged-lane fallback (adds one pad + one slice pass); the common
        # NN-activation path (numel % 128 == 0) is copy-free.
        # TODO(synk): replace with in-kernel tail masking if ragged sizes matter.
        pad = LANES - (n % LANES)
        flat = jnp.pad(flat, (0, pad))
    rows = flat.shape[0] // LANES
    x2d = flat.reshape(rows, LANES)

    block_rows = _choose_block_rows(rows, itemsize)
    grid = (pl.cdiv(rows, block_rows),)

    s_eff = jnp.asarray(s_scale, jnp.float32) + jnp.float32(1e-6)
    params = jnp.stack([
        s_eff,
        jnp.float32(1.0) / s_eff,
        jnp.asarray(beta, jnp.float32),
        jnp.float32(neg_thd),
        jnp.float32(pos_thd),
    ])

    cost = pl.CostEstimate(
        flops=7 * n,                          # sub, mul, 2x clamp, round, mul, add
        transcendentals=0,
        bytes_accessed=2 * n * itemsize,      # memory-bound: read x + write out
    )

    out = pl.pallas_call(
        _lsq_quant_kernel,
        out_shape=jax.ShapeDtypeStruct((rows, LANES), orig_dtype),
        grid_spec=pltpu.PrefetchScalarGridSpec(
            num_scalar_prefetch=1,
            grid=grid,
            in_specs=[pl.BlockSpec((block_rows, LANES), lambda i, p: (i, 0))],
            out_specs=pl.BlockSpec((block_rows, LANES), lambda i, p: (i, 0)),
        ),
        compiler_params=pltpu.CompilerParams(
            dimension_semantics=("parallel",),
            vmem_limit_bytes=VMEM_LIMIT_BYTES,
        ),
        cost_estimate=cost,
    )(params, x2d)

    out_flat = out.reshape(-1)
    if pad:
        out_flat = out_flat[:n]
    return out_flat.reshape(orig_shape)


# ----------------------------------------------------------------------------
# Plain-JAX reproduction of the module (state + one-time MSE init search)
# ----------------------------------------------------------------------------
def _lp_loss_all(pred, tgt, p=2.4):
    return jnp.mean(jnp.abs(pred - tgt) ** p)


class LSQQuantizerForACT:
    def __init__(self, n_bits=8, symmetric=True, channel_wise=False,
                 scale_method='mse', leaf_param=False, layer_number=100):
        self.sym = symmetric
        self.channel_wise = channel_wise
        self.scale_method = scale_method
        self.n_bits = n_bits
        self.leaf_param = leaf_param
        self.layer_number = layer_number
        self.pos_thd = None
        self.neg_thd = None
        self.init_number = 1
        self.init_state = 0
        self.all_positive = False
        self.scale_set_sym = None    # (1, 7)
        self.beta_set_sym = None     # (1, 7)
        self.scale_set_asym = None   # (1, 7)
        self.beta_set_asym = None    # (1, 7)

    # --- threshold bookkeeping (mirrors set_quantization_bit / params) ---
    def set_quantization_bit(self, bit):
        self.n_bits = bit
        if self.all_positive:
            self.pos_thd = 2 ** self.n_bits - 1
            self.neg_thd = 0
        else:
            self.pos_thd = 2 ** (self.n_bits - 1) - 1
            self.neg_thd = -2 ** (self.n_bits - 1)

    def set_quantization_params(self, bit=8, symmetric=False, channel_wise=False):
        self.sym = symmetric
        self.channel_wise = channel_wise
        self.set_quantization_bit(bit)

    # --- one-time MSE grid search (plain JAX, 80 candidates vmapped per bit) ---
    def _symmetric_init(self, x, bit):
        self.set_quantization_bit(bit)
        pos, neg = float(self.pos_thd), float(self.neg_thd)
        x_absmax = jnp.max(jnp.abs(x))
        idx = jnp.arange(80, dtype=jnp.float32)
        new_max = x_absmax * (1.0 - idx * 0.01)
        if self.all_positive:
            scale_c = new_max / (pos - neg)
        else:
            scale_c = 2.0 * new_max / (pos - neg)

        def score_fn(s):
            xq = jnp.round(jnp.clip(x / s, neg, pos)) * s
            return _lp_loss_all(x, xq, p=2.4)

        scores = jax.vmap(score_fn)(scale_c)
        best = jnp.argmin(scores)
        scale = jnp.where(scores[best] < 100000.0, scale_c[best], 1.0)
        return scale

    def _asymmetric_init(self, x, bit):
        self.set_quantization_bit(bit)
        pos, neg = float(self.pos_thd), float(self.neg_thd)
        x_max = jnp.max(x)
        x_min = jnp.min(x)
        idx = jnp.arange(80, dtype=jnp.float32)
        new_max = x_max * (1.0 - idx * 0.01)
        new_min = x_min * (1.0 - idx * 0.01)
        scale_c = (new_max - new_min) / (pos - neg)
        beta_c = new_min - scale_c * neg

        def score_fn(s, b):
            xq = jnp.round(jnp.clip((x - b) / s, neg, pos)) * s + b
            return _lp_loss_all(x, xq, p=2.4)

        scores = jax.vmap(score_fn)(scale_c, beta_c)
        best = jnp.argmin(scores)
        ok = scores[best] < 100000.0
        scale = jnp.where(ok, scale_c[best], 1.0)
        if self.all_positive:
            beta = jnp.where(ok, jnp.float32(-1e-9), jnp.float32(0.0))
        else:
            beta = jnp.where(ok, beta_c[best], 0.0)
        return scale, beta

    def init_quantization_param(self, x):
        if self.init_state == 0:
            self.scale_set_sym = jnp.ones((1, 7), jnp.float32)
            self.beta_set_sym = jnp.zeros((1, 7), jnp.float32)
            self.scale_set_asym = jnp.ones((1, 7), jnp.float32)
            self.beta_set_asym = jnp.zeros((1, 7), jnp.float32)
            # One-time host sync (init-only), mirrors torch.min(x) >= -1e-9.
            if float(jnp.min(x)) >= -1e-9:
                self.all_positive = True
            # cfg.Resume is assumed None (no checkpoint), so run the search.
            for bit in range(2, 9):
                scale_sym = self._symmetric_init(x, bit)
                self.scale_set_sym = self.scale_set_sym.at[0, bit - 2].set(scale_sym)
                scale_asym, beta_asym = self._asymmetric_init(x, bit)
                self.scale_set_asym = self.scale_set_asym.at[0, bit - 2].set(scale_asym)
                self.beta_set_asym = self.beta_set_asym.at[0, bit - 2].set(beta_asym)

    # --- forward: hot path runs in the Pallas kernel ---
    def forward(self, x):
        if self.init_state < self.init_number:
            orig_cw, orig_sym, orig_bit = self.channel_wise, self.sym, self.n_bits
            self.init_quantization_param(x)
            self.init_state += 1
            self.set_quantization_params(bit=orig_bit, symmetric=orig_sym,
                                         channel_wise=orig_cw)

        # grad_scale only affects backward; its forward value is |x|.
        _ = 1.0 / (self.pos_thd * x.size) ** 0.5  # s_grad_scale (kept for fidelity)
        if self.sym:
            s_scale = jnp.abs(self.scale_set_sym[0, self.n_bits - 2])
            beta = self.beta_set_sym[0, self.n_bits - 2]
        else:
            s_scale = jnp.abs(self.scale_set_asym[0, self.n_bits - 2])
            beta = jnp.abs(self.beta_set_asym[0, self.n_bits - 2])  # grad_scale fwd = |beta|

        # TODO(synk): STE/backward (custom_vjp for round_ste & grad_scale) not
        # implemented — only the forward value is reproduced.
        return lsq_fake_quant(x, s_scale, beta, self.neg_thd, self.pos_thd)


# ----------------------------------------------------------------------------
if __name__ == "__main__":
    key = jax.random.PRNGKey(0)
    # NCHW activation, as fed to a conv in PyTorch.
    x = jax.random.normal(key, (2, 4, 16, 16), dtype=jnp.float32)

    quantizer = LSQQuantizerForACT(n_bits=8, symmetric=True, channel_wise=False)
    y = quantizer.forward(x)
    y = jax.block_until_ready(y)

    # Plain-JAX reference of the same forward math (sym path, beta == 0),
    # using the same reciprocal-multiply formulation as the kernel.
    s_eff = jnp.abs(quantizer.scale_set_sym[0, quantizer.n_bits - 2]) + jnp.float32(1e-6)
    inv_s = jnp.float32(1.0) / s_eff
    b = quantizer.beta_set_sym[0, quantizer.n_bits - 2]
    ref = jnp.round(jnp.clip((x - b) * inv_s,
                             quantizer.neg_thd, quantizer.pos_thd)) * s_eff + b
    assert y.shape == x.shape and y.dtype == x.dtype
    assert jnp.allclose(y, ref, atol=1e-4), "Pallas kernel mismatch vs reference"

    print("KERNEL_OK")
</pallas_src>

<mosaic_0001>
module attributes {stable_mosaic.version = 11 : i64} {
  func.func @_lsq_quant_kernel(%arg0: i32, %arg1: memref<5xf32, #tpu.memory_space<smem>>, %arg2: memref<8x128xf32, #tpu.memory_space<vmem>>, %arg3: memref<8x128xf32, #tpu.memory_space<vmem>>) attributes {dimension_semantics = [#tpu.dimension_semantics<parallel>], iteration_bounds = array<i64: 2>, scalar_prefetch = 1 : i64, scratch_operands = 0 : i64, tpu.core_type = #tpu.core_type<tc>, window_params = [{transform_indices = @transform_0, window_bounds = array<i64: 8, 128>}, {transform_indices = @transform_1, window_bounds = array<i64: 8, 128>}]} {
    %c0 = arith.constant 0 : index
    %0 = memref.load %arg1[%c0] : memref<5xf32, #tpu.memory_space<smem>>
    %c1 = arith.constant 1 : index
    %1 = memref.load %arg1[%c1] : memref<5xf32, #tpu.memory_space<smem>>
    %c2 = arith.constant 2 : index
    %2 = memref.load %arg1[%c2] : memref<5xf32, #tpu.memory_space<smem>>
    %c3 = arith.constant 3 : index
    %3 = memref.load %arg1[%c3] : memref<5xf32, #tpu.memory_space<smem>>
    %c4 = arith.constant 4 : index
    %4 = memref.load %arg1[%c4] : memref<5xf32, #tpu.memory_space<smem>>
    %c0_0 = arith.constant 0 : index
    %c0_1 = arith.constant 0 : index
    %5 = vector.load %arg2[%c0_0, %c0_1] : memref<8x128xf32, #tpu.memory_space<vmem>>, vector<8x128xf32>
    %6 = vector.broadcast %2 : f32 to vector<8x128xf32>
    %7 = arith.subf %5, %6 : vector<8x128xf32>
    %8 = vector.broadcast %1 : f32 to vector<8x128xf32>
    %9 = arith.mulf %7, %8 : vector<8x128xf32>
    %10 = vector.broadcast %3 : f32 to vector<8x128xf32>
    %11 = arith.maximumf %10, %9 : vector<8x128xf32>
    %12 = vector.broadcast %4 : f32 to vector<8x128xf32>
    %13 = arith.minimumf %12, %11 : vector<8x128xf32>
    %14 = math.roundeven %13 : vector<8x128xf32>
    %15 = vector.broadcast %0 : f32 to vector<8x128xf32>
    %16 = arith.mulf %14, %15 : vector<8x128xf32>
    %17 = vector.broadcast %2 : f32 to vector<8x128xf32>
    %18 = arith.addf %16, %17 : vector<8x128xf32>
    %c0_2 = arith.constant 0 : index
    %c0_3 = arith.constant 0 : index
    %19 = vector.load %arg3[%c0_2, %c0_3] : memref<8x128xf32, #tpu.memory_space<vmem>>, vector<8x128xf32>
    tpu.vector_store %arg3[%c0_2, %c0_3], %18 {strides = array<i32>} : memref<8x128xf32, #tpu.memory_space<vmem>>, vector<8x128xf32>,
    return
  }
  func.func @transform_0(%arg0: i32, %arg1: memref<5xf32, #tpu.memory_space<smem>>) -> (i32, i32) {
    %c0_i32 = arith.constant 0 : i32
    %c0_i32_0 = arith.constant 0 : i32
    return %arg0, %c0_i32 : i32, i32
  }
  func.func @transform_1(%arg0: i32, %arg1: memref<5xf32, #tpu.memory_space<smem>>) -> (i32, i32) {
    %c0_i32 = arith.constant 0 : i32
    %c0_i32_0 = arith.constant 0 : i32
    return %arg0, %c0_i32 : i32, i32
  }
}

</mosaic_0001>

<llo_original>
// kernel: tpu_custom_call.1
$region0: #{tpu_custom_call.1}
  #allocation0 [shape = 'u32[]', space=smem, size = 0x4, offset = 0x4, fixed_abs, tag = 'smem constant byte address 0x4 - core index']
  #allocation1 [shape = 'u32[144,128]{1,0:T(1,128)}', space=vmem, size = 0x12000, scoped, tag = 'internal scratch']
  #allocation2 [shape = 's32[1]{0}', space=sflag, size = 0x4, scoped, tag = 'scoped memory for tpu_custom_call.1']
  #allocation3 [shape = 'u8[512]{0}', space=smem, size = 0x200, scoped, tag = 'prefetched SMEM operand 0']
  %s0 = inlined_call_operand.hbm [shape: f32[5], index: 0, kind: input, shape index: {}]
  %s1 = inlined_call_operand.hbm [shape: f32[16,128], index: 1, kind: input, shape index: {}]
  %s2 = inlined_call_operand.hbm [shape: f32[16,128], index: 2, kind: output, shape index: {}]
  %s3 = sld [smem:[#allocation0]]
  $region41: #{tpu_custom_call.1} parent=0
    _
  %s5 = ssub.s32 1, %s3
  %s6 = scalar_select 0, %s5, %s3
  %8 = dma.hbm_to_smem %s0, 16, [#allocation3], [#allocation2]
  %9 = dma.done [#allocation2], 16
  %10 = sfence
  $region1: #{tpu_custom_call.1} parent=0
    #allocation4 [shape = 'u8[8192]{0}', space=vmem, size = 0x2000, scoped, tag = 'input window, operand 1']
    #allocation5 [shape = 's32[2]{0}', space=sflag, size = 0x8, scoped, tag = 'scoped memory for tpu_custom_call.1']
    #allocation6 [shape = 's32[2]{0}', space=sflag, size = 0x8, scoped, tag = 'scoped memory for tpu_custom_call.1']
    #allocation7 [shape = 'u8[8192]{0}', space=vmem, size = 0x2000, scoped, tag = 'output window, operand 0']
    %11 = vsyncpa [#allocation5], 0
    %s12 = scalar_lea.sflag [#allocation5], 1
    %13 = vsyncpa %s12, 0
    %14 = vsyncpa [#allocation6], 0
    %s15 = scalar_lea.sflag [#allocation6], 1
    %16 = vsyncpa %s15, 0
    loop: start=0, step=1, limit=4
    $region2: #{tpu_custom_call.1} parent=1 // loop_pre_header
      _
    $region3: #{tpu_custom_call.1} parent=1 // loop_header
      %s18 = sphi 0, %s22
      %p19 = scmp.ge.s32.totalorder %s18, 4
      %s28 = sphi 0, %s30
      %s31 = sphi 0, %s28
      %s32 = sphi 0, %s31
      %s48 = sphi 0, %s32
      %s54 = sphi 0, %s56
      %s57 = sphi 0, %s54
      %s58 = sphi 0, %s57
      %s74 = sphi 0, %s58
    $region4: #{tpu_custom_call.1} parent=1 // loop_header_branch
      %21 = sbr.rel (%p19) target = $region8
    $region5: #{tpu_custom_call.1} parent=1 // loop_body
      %s23 = ssub.s32 %s18, 1
      %s24 = ssub.s32 %s18, 2
      %s25 = sadd.s32 %s18, 1
      %s26 = ssub.s32 %s18, %s25
      %p27 = scmp.eq.s32.totalorder %s26, 0
      %s29 = sadd.s32 %s28, 1
      %s30 = scalar_select %p27, %s28, %s29
      %p33 = pneg %p27
      %p34 = scmp.eq.s32.totalorder %s18, 1
      %p35 = por %p33, %p34
      %p36 = scmp.ne.s32.totalorder %s28, %s31
      %p37 = scmp.eq.s32.totalorder %s18, 0
      %p38 = por %p36, %p37
      %p39 = scmp.ne.s32.totalorder %s28, %s31
      %p40 = scmp.eq.s32.totalorder %s23, 1
      %p41 = por %p39, %p40
      %p42 = scmp.ne.s32.totalorder %s31, %s32
      %p43 = scmp.eq.s32.totalorder %s23, 0
      %p44 = por %p42, %p43
      %p45 = scmp.ne.s32.totalorder %s31, %s32
      %p46 = scmp.eq.s32.totalorder %s24, 1
      %p47 = por %p45, %p46
      %p49 = scmp.ne.s32.totalorder %s32, %s48
      %p50 = scmp.eq.s32.totalorder %s24, 0
      %p51 = por %p49, %p50
      %s52 = ssub.s32 %s18, %s25
      %p53 = scmp.eq.s32.totalorder %s52, 0
      %s55 = sadd.s32 %s54, 1
      %s56 = scalar_select %p53, %s54, %s55
      %p59 = pneg %p53
      %p60 = scmp.eq.s32.totalorder %s18, 1
      %p61 = por %p59, %p60
      %p62 = scmp.ne.s32.totalorder %s54, %s57
      %p63 = scmp.eq.s32.totalorder %s18, 0
      %p64 = por %p62, %p63
      %p65 = scmp.ne.s32.totalorder %s54, %s57
      %p66 = scmp.eq.s32.totalorder %s23, 1
      %p67 = por %p65, %p66
      %p68 = scmp.ne.s32.totalorder %s57, %s58
      %p69 = scmp.eq.s32.totalorder %s23, 0
      %p70 = por %p68, %p69
      %p71 = scmp.ne.s32.totalorder %s57, %s58
      %p72 = scmp.eq.s32.totalorder %s24, 1
      %p73 = por %p71, %p72
      %p75 = scmp.ne.s32.totalorder %s58, %s74
      %p76 = scmp.eq.s32.totalorder %s24, 0
      %p77 = por %p75, %p76
      %p78 = scmp.le.s32.totalorder 1, %s18
      %p79 = scmp.lt.s32.totalorder %s18, 3
      %p80 = pnand %p78, %p79
      %p81 = pneg %p80
      // Predicated region
      $region9: #{tpu_custom_call.1} parent=5 // pred_check
        _
      $region10: #{tpu_custom_call.1} parent=5 // pred_check_branch
        %83 = sbr.rel (%p80) target = $region12
      $region11: #{tpu_custom_call.1} parent=5 // pred_region
        %s84 = ssub.s32 %s18, 1
      $region12: #{tpu_custom_call.1} parent=5 // pred_fallthru
        _
      %p85 = scmp.lt.s32.totalorder %s18, 2
      // Predicated region
      $region13: #{tpu_custom_call.1} parent=5 // pred_check
        %p86 = pneg %p85
      $region14: #{tpu_custom_call.1} parent=5 // pred_check_branch
        %88 = sbr.rel (%p86) target = $region16
      $region15: #{tpu_custom_call.1} parent=5 // pred_region
        // Predicated region
        $region17: #{tpu_custom_call.1} parent=15 // pred_check
          %p89 = pneg %p38
        $region18: #{tpu_custom_call.1} parent=15 // pred_check_branch
          %91 = sbr.rel (%p89) target = $region20
        $region19: #{tpu_custom_call.1} parent=15 // pred_region
          %s92 = sand.u32 %s28, 1
          %s93 = scalar_lea.sflag [#allocation5], %s92
          %s94 = sand.u32 %s28, 1
          %s95 = smul.addr %s94, 8
          %s96 = scalar_lea.vmem [#allocation4], %s95
          %s98 = ssub.s32 128, 128
          %99 = vsyncadd %s93, %s98
          %s100 = smul.addr %s18, 128
          %s101 = scalar_lea.hbm %s1, %s100
          %s103 = sshll.u32 %s96, 4
          %s104 = int_to_ptr.vmem [resolvable:$true] %s103
          %106 = dma.hbm_to_vmem [thread:$0]  %s101, 128, %s104, %s93
        $region20: #{tpu_custom_call.1} parent=15 // pred_fallthru
          _
      $region16: #{tpu_custom_call.1} parent=5 // pred_fallthru
        _
      %p107 = scmp.le.s32.totalorder 1, %s18
      %p108 = scmp.lt.s32.totalorder %s18, 3
      %p109 = pnand %p107, %p108
      %p110 = pneg %p109
      // Predicated region
      $region21: #{tpu_custom_call.1} parent=5 // pred_check
        _
      $region22: #{tpu_custom_call.1} parent=5 // pred_check_branch
        %112 = sbr.rel (%p109) target = $region24
      $region23: #{tpu_custom_call.1} parent=5 // pred_region
        %s113 = ssub.s32 %s18, 1
        %s114 = sand.u32 %s31, 1
        %s115 = scalar_lea.sflag [#allocation5], %s114
        %s116 = sand.u32 %s31, 1
        %s117 = smul.addr %s116, 8
        %s118 = scalar_lea.vmem [#allocation4], %s117
        // Predicated region
        $region25: #{tpu_custom_call.1} parent=23 // pred_check
          %p119 = pneg %p44
        $region26: #{tpu_custom_call.1} parent=23 // pred_check_branch
          %121 = sbr.rel (%p119) target = $region28
        $region27: #{tpu_custom_call.1} parent=23 // pred_region
          %122 = dma.done %s115, 128
        $region28: #{tpu_custom_call.1} parent=23 // pred_fallthru
          _
        %s123 = sand.u32 %s31, 1
        %s124 = scalar_lea.sflag [#allocation5], %s123
        %s125 = sand.u32 %s31, 1
        %s126 = smul.addr %s125, 8
        %s127 = scalar_lea.vmem [#allocation4], %s126
        %p128 = pneg %p44
        %p129 = pneg %p41
        %p130 = pneg %p70
        %p131 = pneg %p67
        %s132 = sand.u32 %s57, 1
        %s133 = scalar_lea.sflag [#allocation6], %s132
        %s134 = sand.u32 %s57, 1
        %s135 = smul.addr %s134, 8
        %s136 = scalar_lea.vmem [#allocation7], %s135
        %s137 = sld [smem:[#allocation3]]
        %s138 = sld [smem:[#allocation3 + $0x1]]
        %s139 = sld [smem:[#allocation3 + $0x2]]
        %s140 = sld [smem:[#allocation3 + $0x3]]
        %s141 = sld [smem:[#allocation3 + $0x4]]
        %v142 = vld [vmem:[%s118] sm:$0xff]
        %v143 = vstv %s139
        %v144 = vsub.f32 %v142, %v143
        %v145 = vstv %s138
        %v146 = vmul.f32 %v144, %v145
        %v147 = vstv %s140
        %v148 = vmax.f32 %v147, %v146
        %v149 = vstv %s141
        %v150 = vmin.f32 %v149, %v148
        %v151 = vround.ne.pseudo %v150
        %v152 = vstv %s137
        %v153 = vmul.f32 %v151, %v152
        %v154 = vadd.f32 %v153, %v143
        %155 = vst [vmem:[%s136] sm:$0xff] %v154
        %s156 = sand.u32 %s57, 1
        %s157 = scalar_lea.sflag [#allocation6], %s156
        %s158 = sand.u32 %s57, 1
        %s159 = smul.addr %s158, 8
        %s160 = scalar_lea.vmem [#allocation7], %s159
        // Predicated region
        $region29: #{tpu_custom_call.1} parent=23 // pred_check
          %p161 = pneg %p67
        $region30: #{tpu_custom_call.1} parent=23 // pred_check_branch
          %163 = sbr.rel (%p161) target = $region32
        $region31: #{tpu_custom_call.1} parent=23 // pred_region
          %s165 = ssub.s32 128, 128
          %166 = vsyncadd %s157, %s165
          %s167 = smul.addr %s23, 128
          %s168 = scalar_lea.hbm %s2, %s167
          %s170 = sshll.u32 %s160, 4
          %s171 = int_to_ptr.vmem [resolvable:$true] %s170
          %173 = dma.vmem_to_hbm [thread:$0]  %s171, 128, %s168, %s157
        $region32: #{tpu_custom_call.1} parent=23 // pred_fallthru
          _
      $region24: #{tpu_custom_call.1} parent=5 // pred_fallthru
        _
      %p174 = scmp.le.s32.totalorder 2, %s18
      // Predicated region
      $region33: #{tpu_custom_call.1} parent=5 // pred_check
        %p175 = pneg %p174
      $region34: #{tpu_custom_call.1} parent=5 // pred_check_branch
        %177 = sbr.rel (%p175) target = $region36
      $region35: #{tpu_custom_call.1} parent=5 // pred_region
        %s178 = ssub.s32 %s18, 2
        // Predicated region
        $region37: #{tpu_custom_call.1} parent=35 // pred_check
          %p179 = pneg %p73
        $region38: #{tpu_custom_call.1} parent=35 // pred_check_branch
          %181 = sbr.rel (%p179) target = $region40
        $region39: #{tpu_custom_call.1} parent=35 // pred_region
          %s182 = sand.u32 %s58, 1
          %s183 = scalar_lea.sflag [#allocation6], %s182
          %s184 = sand.u32 %s58, 1
          %s185 = smul.addr %s184, 8
          %s186 = scalar_lea.vmem [#allocation7], %s185
          %187 = dma.done %s183, 128
        $region40: #{tpu_custom_call.1} parent=35 // pred_fallthru
          _
      $region36: #{tpu_custom_call.1} parent=5 // pred_fallthru
        _
    $region6: #{tpu_custom_call.1} parent=1 // loop_footer
      %s22 = sadd.s32 1, %s18
    $region7: #{tpu_custom_call.1} parent=1 // loop_footer_branch
      %17 = sbr.rel target = $region3
    $region8: #{tpu_custom_call.1} parent=1 // loop_exit
      _
    %188 = vsyncpa [#allocation5], 1
    %s189 = scalar_lea.sflag [#allocation5], 1
    %190 = vsyncpa %s189, 1
    %191 = vsyncpa [#allocation6], 1
    %s192 = scalar_lea.sflag [#allocation6], 1
    %193 = vsyncpa %s192, 1

</llo_original>
